<compile_context>
chip_gen: v5e
topology: v5e:2x2
jax: 0.10.0
libtpu: 0.0.40
codegen_flags: <defaults>
</compile_context>

<pallas_src>
import math

import jax
import jax.numpy as jnp
from jax.experimental import pallas as pl
from jax.experimental.pallas import tpu as pltpu


_VMEM_LIMIT_BYTES = 32 << 20        # explicit scoped-VMEM limit; safe on v5e/v6e/v7x
_DEFAULT_BLOCK_BUDGET = 10 << 20    # total double-buffered working set per step


# --------------------------------------------------------------------------- #
# Kernels
# --------------------------------------------------------------------------- #
def _add_pe_flat_kernel(x_ref, pe_ref, o_ref):
    # x_ref / o_ref: (B, TF) lane-dense blocks; pe_ref: (1, TF), broadcast over
    # the B sublane rows.  Add happens in the promoted dtype, cast back on store.
    o_ref[...] = (x_ref[...] + pe_ref[...]).astype(o_ref.dtype)


def _add_pe_3d_kernel(x_ref, pe_ref, o_ref):
    # x_ref / o_ref: (B, TL, D); pe_ref: (TL, D), broadcast over the batch dim.
    o_ref[...] = (x_ref[...] + pe_ref[...][None, :, :]).astype(o_ref.dtype)


# --------------------------------------------------------------------------- #
# Helpers
# --------------------------------------------------------------------------- #
def make_positional_encoding(max_len, d_model, dtype=jnp.float32):
    """Pure-JAX PE table, computed once (matches the torch pos_encoding()).

    Note: the torch code only supports even d_model; odd d_model is truncated
    here rather than erroring.
    """
    position = jnp.arange(max_len, dtype=jnp.float32)[:, None]               # (L, 1)
    div_term = jnp.exp(
        jnp.arange(0, d_model, 2, dtype=jnp.float32)
        * (-math.log(10000.0) / d_model)
    )                                                                        # (ceil(D/2),)
    angles = position * div_term                                             # (L, ceil(D/2))
    pe = jnp.stack([jnp.sin(angles), jnp.cos(angles)], axis=-1)              # interleave
    pe = pe.reshape(max_len, -1)[:, :d_model]
    return pe.astype(dtype)


def _round_up(n, m):
    return ((n + m - 1) // m) * m


def _sublane(itemsize):
    # 8 rows for 4-byte, 16 for 2-byte, 32 for 1-byte dtypes.
    return max(8, 32 // max(1, itemsize))


def _largest_pow2_multiple(base, limit):
    """Largest base * 2**k that is <= limit (returns base if limit < 2*base)."""
    v = base
    while v * 2 <= limit:
        v *= 2
    return v


# --------------------------------------------------------------------------- #
# Wrapper
# --------------------------------------------------------------------------- #
def transformer_positional_encoding(x, pe=None, *, block_budget_bytes=_DEFAULT_BLOCK_BUDGET):
    """x: (batch, max_len, d_model) -> x + PE (PE broadcast over batch)."""
    B, L, D = x.shape
    x_it = jnp.dtype(x.dtype).itemsize

    if pe is None:
        pe = make_positional_encoding(L, D)
    pe = pe.astype(jnp.float32)
    pe_it = 4

    cost = pl.CostEstimate(
        flops=B * L * D,
        transcendentals=0,
        bytes_accessed=2 * B * L * D * x_it + L * D * pe_it,
    )
    cparams = pltpu.CompilerParams(
        dimension_semantics=("parallel",),
        vmem_limit_bytes=_VMEM_LIMIT_BYTES,
    )

    F = L * D
    if F % 128 == 0:
        # ---- Path A: lane-dense flattened layout, batch folded into the block.
        # Working set per step: 2*(x block) + 2*(out block) + 2*(PE block).
        denom = 4 * B * x_it + 2 * pe_it          # bytes per flattened column
        max_tf = max(128, block_budget_bytes // denom)
        if F <= max_tf:
            tf = F
            # v7x has 2 TensorCores: keep >=2 parallel grid steps when the
            # array is big enough for the split to matter.
            if B * F * x_it > (2 << 20) and F >= 256:
                tf = _round_up(pl.cdiv(F, 2), 128)
        else:
            tf = _largest_pow2_multiple(128, max_tf)
        n_f = pl.cdiv(F, tf)

        x2 = x.reshape(B, F)
        pe2 = pe.reshape(1, F)
        out = pl.pallas_call(
            _add_pe_flat_kernel,
            out_shape=jax.ShapeDtypeStruct((B, F), x.dtype),
            grid_spec=pltpu.PrefetchScalarGridSpec(
                num_scalar_prefetch=0,
                grid=(n_f,),
                in_specs=[
                    pl.BlockSpec((B, tf), lambda f: (0, f)),    # x  (batch folded)
                    pl.BlockSpec((1, tf), lambda f: (0, f)),    # PE (batch-bcast)
                ],
                out_specs=pl.BlockSpec((B, tf), lambda f: (0, f)),
            ),
            compiler_params=cparams,
            cost_estimate=cost,
        )(x2, pe2)
        return out.reshape(B, L, D)

    # ---- Path B: d_model not lane-dense-able without padding; tile the
    # sequence axis, keep full d_model in lanes, fold batch into the block.
    sub = _sublane(x_it)
    denom = 4 * B * D * x_it + 2 * D * pe_it      # bytes per sequence row
    max_tl = max(sub, block_budget_bytes // denom)
    if L <= max_tl:
        tl = L
    else:
        tl = _largest_pow2_multiple(sub, max_tl)
    n_l = pl.cdiv(L, tl)

    return pl.pallas_call(
        _add_pe_3d_kernel,
        out_shape=jax.ShapeDtypeStruct((B, L, D), x.dtype),
        grid_spec=pltpu.PrefetchScalarGridSpec(
            num_scalar_prefetch=0,
            grid=(n_l,),
            in_specs=[
                pl.BlockSpec((B, tl, D), lambda l: (0, l, 0)),  # x  (batch folded)
                pl.BlockSpec((tl, D), lambda l: (l, 0)),        # PE (batch-bcast)
            ],
            out_specs=pl.BlockSpec((B, tl, D), lambda l: (0, l, 0)),
        ),
        compiler_params=cparams,
        cost_estimate=cost,
    )(x, pe)


# --------------------------------------------------------------------------- #
# Pure-JAX reference mirroring the torch/numpy code
# --------------------------------------------------------------------------- #
def _reference(x):
    B, L, D = x.shape
    position = jnp.arange(0, L, dtype=jnp.float32)[:, None]
    div_term = jnp.exp(jnp.arange(0, D, 2, dtype=jnp.float32)
                       * -(jnp.log(10000.0) / D))
    pe = jnp.zeros((L, D), dtype=jnp.float32)
    pe = pe.at[:, 0::2].set(jnp.sin(position * div_term))
    pe = pe.at[:, 1::2].set(jnp.cos(position * div_term))
    return x + pe[None, :, :]


if __name__ == "__main__":
    key = jax.random.PRNGKey(0)

    # 1) Small shape consistent with SimpleGoal (num_agents=2, num_obs_steps=8, dim=32).
    #    F = 256 -> lane-dense flattened path, single grid-free block.
    x1 = jax.random.normal(key, (2, 8, 32), dtype=jnp.float32)
    out1 = jax.block_until_ready(transformer_positional_encoding(x1))
    assert out1.shape == (2, 8, 32)
    assert jnp.allclose(out1, _reference(x1), atol=1e-5, rtol=1e-5), "mismatch (tiny)"

    # 2) Lane-dense d_model, still a single block.
    x2 = jax.random.normal(jax.random.PRNGKey(0), (4, 24, 128), dtype=jnp.float32)
    out2 = jax.block_until_ready(transformer_positional_encoding(x2))
    assert jnp.allclose(out2, _reference(x2), atol=1e-5, rtol=1e-5), "mismatch (dense)"

    # 3) Force the tiled lane-dense path (small block budget -> multiple grid steps).
    x3 = jax.random.normal(jax.random.PRNGKey(0), (4, 64, 128), dtype=jnp.float32)
    out3 = jax.block_until_ready(
        transformer_positional_encoding(x3, block_budget_bytes=1 << 16))
    assert jnp.allclose(out3, _reference(x3), atol=1e-5, rtol=1e-5), "mismatch (tiled flat)"

    # 4) Force the 3-D fallback path (L*D not a multiple of 128, tiled over seq).
    x4 = jax.random.normal(jax.random.PRNGKey(0), (2, 40, 24), dtype=jnp.float32)
    out4 = jax.block_until_ready(
        transformer_positional_encoding(x4, block_budget_bytes=8192))
    assert jnp.allclose(out4, _reference(x4), atol=1e-5, rtol=1e-5), "mismatch (3d fallback)"

    print("KERNEL_OK")
</pallas_src>

<mosaic_0001>
module attributes {stable_mosaic.version = 11 : i64} {
  func.func @_add_pe_flat_kernel(%arg0: i32, %arg1: memref<2x256xf32, #tpu.memory_space<vmem>>, %arg2: memref<1x256xf32, #tpu.memory_space<vmem>>, %arg3: memref<2x256xf32, #tpu.memory_space<vmem>>) attributes {dimension_semantics = [#tpu.dimension_semantics<parallel>], iteration_bounds = array<i64: 1>, scalar_prefetch = 0 : i64, scratch_operands = 0 : i64, tpu.core_type = #tpu.core_type<tc>, window_params = [{transform_indices = @transform_0, window_bounds = array<i64: 2, 256>}, {transform_indices = @transform_1, window_bounds = array<i64: 1, 256>}, {transform_indices = @transform_2, window_bounds = array<i64: 2, 256>}]} {
    %c0 = arith.constant 0 : index
    %c0_0 = arith.constant 0 : index
    %0 = vector.load %arg1[%c0, %c0_0] : memref<2x256xf32, #tpu.memory_space<vmem>>, vector<2x256xf32>
    %c0_1 = arith.constant 0 : index
    %c0_2 = arith.constant 0 : index
    %1 = vector.load %arg2[%c0_1, %c0_2] : memref<1x256xf32, #tpu.memory_space<vmem>>, vector<1x256xf32>
    %2 = vector.broadcast %1 : vector<1x256xf32> to vector<2x256xf32>
    %3 = arith.addf %0, %2 : vector<2x256xf32>
    %c0_3 = arith.constant 0 : index
    %c0_4 = arith.constant 0 : index
    %4 = vector.load %arg3[%c0_3, %c0_4] : memref<2x256xf32, #tpu.memory_space<vmem>>, vector<2x256xf32>
    tpu.vector_store %arg3[%c0_3, %c0_4], %3 {strides = array<i32>} : memref<2x256xf32, #tpu.memory_space<vmem>>, vector<2x256xf32>,
    return
  }
  func.func @transform_0(%arg0: i32) -> (i32, i32) {
    %c0_i32 = arith.constant 0 : i32
    %c0_i32_0 = arith.constant 0 : i32
    return %c0_i32, %arg0 : i32, i32
  }
  func.func @transform_1(%arg0: i32) -> (i32, i32) {
    %c0_i32 = arith.constant 0 : i32
    %c0_i32_0 = arith.constant 0 : i32
    return %c0_i32, %arg0 : i32, i32
  }
  func.func @transform_2(%arg0: i32) -> (i32, i32) {
    %c0_i32 = arith.constant 0 : i32
    %c0_i32_0 = arith.constant 0 : i32
    return %c0_i32, %arg0 : i32, i32
  }
}

</mosaic_0001>

<llo_original>
// kernel: tpu_custom_call.1
$region0: #{tpu_custom_call.1}
  #allocation0 [shape = 'u32[]', space=smem, size = 0x4, offset = 0x4, fixed_abs, tag = 'smem constant byte address 0x4 - core index']
  #allocation1 [shape = 'u32[72,128]{1,0:T(1,128)}', space=vmem, size = 0x9000, scoped, tag = 'internal scratch']
  %s0 = inlined_call_operand.hbm [shape: f32[2,256], index: 0, kind: input, shape index: {}]
  %s1 = inlined_call_operand.hbm [shape: f32[1,256], index: 1, kind: input, shape index: {}]
  %s2 = inlined_call_operand.hbm [shape: f32[2,256], index: 2, kind: output, shape index: {}]
  %s3 = sld [smem:[#allocation0]]
  $region26: #{tpu_custom_call.1} parent=0
    _
  %s5 = ssub.s32 1, %s3
  %s6 = scalar_select 0, %s5, %s3
  $region1: #{tpu_custom_call.1} parent=0
    #allocation2 [shape = 'u8[2048]{0}', space=vmem, size = 0x800, scoped, tag = 'input window, operand 0, single buffered']
    #allocation3 [shape = 's32[1]{0}', space=sflag, size = 0x4, scoped, tag = 'scoped memory for tpu_custom_call.1']
    #allocation4 [shape = 's32[1]{0}', space=sflag, size = 0x4, scoped, tag = 'scoped memory for tpu_custom_call.1']
    #allocation5 [shape = 'u8[1024]{0}', space=vmem, size = 0x400, scoped, tag = 'input window, operand 1, single buffered']
    #allocation6 [shape = 's32[1]{0}', space=sflag, size = 0x4, scoped, tag = 'scoped memory for tpu_custom_call.1']
    #allocation7 [shape = 'u8[2048]{0}', space=vmem, size = 0x800, scoped, tag = 'output window, operand 0, single buffered']
    %7 = vsyncpa [#allocation3], 0
    %8 = vsyncpa [#allocation6], 0
    %9 = vsyncpa [#allocation4], 0
    // Predicated region
    $region2: #{tpu_custom_call.1} parent=1 // pred_check
      _
    $region3: #{tpu_custom_call.1} parent=1 // pred_check_branch
      %11 = sbr.rel (0) target = $region5
    $region4: #{tpu_custom_call.1} parent=1 // pred_region
      %13 = vsyncadd [#allocation3], 0
      %s15 = sshll.u32 %s0, 4
      %s16 = int_to_ptr.hbm [resolvable:$true] %s15
      %s17 = sshll.u32 [#allocation2], 4
      %s18 = int_to_ptr.vmem [resolvable:$true] %s17
      %20 = dma.hbm_to_vmem [thread:$0]  %s16, 64, %s18, [#allocation3]
    $region5: #{tpu_custom_call.1} parent=1 // pred_fallthru
      _
    // Predicated region
    $region6: #{tpu_custom_call.1} parent=1 // pred_check
      _
    $region7: #{tpu_custom_call.1} parent=1 // pred_check_branch
      %22 = sbr.rel (0) target = $region9
    $region8: #{tpu_custom_call.1} parent=1 // pred_region
      %24 = vsyncadd [#allocation6], 0
      %s26 = sshll.u32 %s1, 4
      %s27 = int_to_ptr.hbm [resolvable:$true] %s26
      %s28 = sshll.u32 [#allocation5], 4
      %s29 = int_to_ptr.vmem [resolvable:$true] %s28
      %31 = dma.hbm_to_vmem [thread:$0]  %s27, 32, %s29, [#allocation6]
    $region9: #{tpu_custom_call.1} parent=1 // pred_fallthru
      _
    // Predicated region
    $region10: #{tpu_custom_call.1} parent=1 // pred_check
      _
    $region11: #{tpu_custom_call.1} parent=1 // pred_check_branch
      %33 = sbr.rel (0) target = $region13
    $region12: #{tpu_custom_call.1} parent=1 // pred_region
      %35 = dma.done [#allocation3], 64
    $region13: #{tpu_custom_call.1} parent=1 // pred_fallthru
      _
    // Predicated region
    $region14: #{tpu_custom_call.1} parent=1 // pred_check
      _
    $region15: #{tpu_custom_call.1} parent=1 // pred_check_branch
      %37 = sbr.rel (0) target = $region17
    $region16: #{tpu_custom_call.1} parent=1 // pred_region
      %39 = dma.done [#allocation6], 32
    $region17: #{tpu_custom_call.1} parent=1 // pred_fallthru
      _
    %v40 = vld [vmem:[#allocation2] sm:$0xf]
    %v41 = vld [vmem:[#allocation5] sm:$0x3]
    %v43 = vperm.slane %v41, 0
    %v44 = vperm.slane %v41, 1
    %v45 = vrot.slane %v44, 6
    %vm46 = vcmask 1041408
    %v47 = vsel %vm46, %v43, %v45
    %v49 = vadd.f32 %v40, %v47
    %50 = vst [vmem:[#allocation7] sm:$0xf] %v49
    // Predicated region
    $region18: #{tpu_custom_call.1} parent=1 // pred_check
      _
    $region19: #{tpu_custom_call.1} parent=1 // pred_check_branch
      %52 = sbr.rel (0) target = $region21
    $region20: #{tpu_custom_call.1} parent=1 // pred_region
      %54 = vsyncadd [#allocation4], 0
      %s56 = sshll.u32 [#allocation7], 4
      %s57 = int_to_ptr.vmem [resolvable:$true] %s56
      %s58 = sshll.u32 %s2, 4
      %s59 = int_to_ptr.hbm [resolvable:$true] %s58
      %61 = dma.vmem_to_hbm [thread:$0]  %s57, 64, %s59, [#allocation4]
    $region21: #{tpu_custom_call.1} parent=1 // pred_fallthru
      _
    // Predicated region
    $region22: #{tpu_custom_call.1} parent=1 // pred_check
      _
    $region23: #{tpu_custom_call.1} parent=1 // pred_check_branch
      %63 = sbr.rel (0) target = $region25
    $region24: #{tpu_custom_call.1} parent=1 // pred_region
      %65 = dma.done [#allocation4], 64
    $region25: #{tpu_custom_call.1} parent=1 // pred_fallthru
      _
    %66 = vsyncpa [#allocation3], 1
    %67 = vsyncpa [#allocation6], 1
    %68 = vsyncpa [#allocation4], 1

</llo_original>
